<compile_context>
chip_gen: v6e
topology: v6e:2x2x1
jax: 0.10.0
libtpu: 0.0.40
codegen_flags: <defaults>
</compile_context>

<pallas_src>
import jax
import jax.numpy as jnp
from jax.experimental import pallas as pl
from jax.experimental.pallas import tpu as pltpu


def _round_up(x, m):
    return ((x + m - 1) // m) * m


def transition_kernel(x2_ref, x1w_ref, wl_ref, sl_ref, bl_ref,
                      wr_ref, sr_ref, br_ref, o_ref):
    fp = sl_ref.shape[-1]  # lane-padded f_channels (static Python int)

    # ----- left branch: 1x1 conv (matmul) + folded BN + ReLU -----
    left = jnp.dot(x2_ref[...], wl_ref[...], preferred_element_type=jnp.float32)
    left = jnp.maximum(left * sl_ref[...] + bl_ref[...], 0.0)
    o_ref[:, :fp] = left.astype(o_ref.dtype)          # lane-aligned slice store

    # ----- right branch: 2x2/2 max-pool + 1x1 conv + folded BN + ReLU -----
    # window axis leads -> reduction is 3 VPU vmax ops, tiles stay lane-dense
    pooled = jnp.max(x1w_ref[...], axis=0)                       # (tile_m, C2)
    right = jnp.dot(pooled, wr_ref[...], preferred_element_type=jnp.float32)
    right = jnp.maximum(right * sr_ref[...] + br_ref[...], 0.0)
    o_ref[:, fp:] = right.astype(o_ref.dtype)          # lane-aligned slice store


def transition_forward(x2, x1, params, *, tile_m=512, compute_dtype=None):
    """x2: (N, C1, H, W), x1: (N, C2, 2H, 2W)  ->  (N, 2F, H, W)

    compute_dtype=jnp.bfloat16 is recommended on v6e/v7x (halves input DMA,
    bf16 MXU); accumulation and the BN/ReLU epilogue stay in f32.
    """
    N, C1, H, W = x2.shape
    _, C2, H2, W2 = x1.shape
    assert H2 == 2 * H and W2 == 2 * W, "even spatial dims (ceil_mode pool is exact)"
    F = params["w_left"].shape[1]
    Fp = _round_up(F, 128)                      # lane-dense output halves
    M = N * H * W

    # --- tile size: big (>= 128, multiple of 128), capped by M and by VMEM ---
    tile_m = max(128, _round_up(tile_m, 128))
    tile_m = min(tile_m, _round_up(M, 128))
    elt = 2 if compute_dtype == jnp.bfloat16 else 4
    row_bytes = elt * (C1 + 4 * C2) + 4 * 2 * Fp        # in + out tile bytes / row
    while tile_m > 128 and 2 * tile_m * row_bytes > 12 * 1024 * 1024:
        tile_m //= 2                                    # stay under scoped VMEM
    Mp = _round_up(M, tile_m)

    # --- layout glue (NCHW -> channels-last, window-axis-leading windows) ---
    x2_flat = jnp.transpose(x2, (0, 2, 3, 1)).reshape(M, C1)
    x1_win = (jnp.transpose(x1, (0, 2, 3, 1))           # (N, 2H, 2W, C2)
              .reshape(N, H, 2, W, 2, C2)
              .transpose(2, 4, 0, 1, 3, 5)              # (2, 2, N, H, W, C2)
              .reshape(4, M, C2))

    # --- pad F to lane width (zeros -> padded lanes produce 0, stripped later) ---
    def pad_lanes(a):
        return a if Fp == F else jnp.pad(a, ((0, 0), (0, Fp - F)))

    wl = pad_lanes(params["w_left"])
    wr = pad_lanes(params["w_right"])
    sl = pad_lanes(params["scale_left"]).astype(jnp.float32)
    bl = pad_lanes(params["bias_left"]).astype(jnp.float32)
    sr = pad_lanes(params["scale_right"]).astype(jnp.float32)
    br = pad_lanes(params["bias_right"]).astype(jnp.float32)

    if compute_dtype is not None:
        x2_flat = x2_flat.astype(compute_dtype)
        x1_win = x1_win.astype(compute_dtype)
        wl = wl.astype(compute_dtype)
        wr = wr.astype(compute_dtype)

    # --- pad rows to a multiple of tile_m (guarded last tile) ---
    if Mp != M:
        x2_flat = jnp.pad(x2_flat, ((0, Mp - M), (0, 0)))
        x1_win = jnp.pad(x1_win, ((0, 0), (0, Mp - M), (0, 0)))

    out_flat = pl.pallas_call(
        transition_kernel,
        out_shape=jax.ShapeDtypeStruct((Mp, 2 * Fp), x2.dtype),
        grid=(Mp // tile_m,),
        in_specs=[
            pl.BlockSpec((tile_m, C1), lambda i: (i, 0)),        # x2 rows
            pl.BlockSpec((4, tile_m, C2), lambda i: (0, i, 0)),  # pool windows
            pl.BlockSpec((C1, Fp), lambda i: (0, 0)),            # w_left
            pl.BlockSpec((1, Fp), lambda i: (0, 0)),             # scale_left
            pl.BlockSpec((1, Fp), lambda i: (0, 0)),             # bias_left
            pl.BlockSpec((C2, Fp), lambda i: (0, 0)),            # w_right
            pl.BlockSpec((1, Fp), lambda i: (0, 0)),             # scale_right
            pl.BlockSpec((1, Fp), lambda i: (0, 0)),             # bias_right
        ],
        out_specs=pl.BlockSpec((tile_m, 2 * Fp), lambda i: (i, 0)),
        compiler_params=pltpu.CompilerParams(
            dimension_semantics=("parallel",)),
    )(x2_flat, x1_win, wl, sl, bl, wr, sr, br)

    # strip row/lane padding, back to NCHW
    if Fp == F:
        out2f = out_flat[:M]
    else:
        out2f = jnp.concatenate(
            [out_flat[:M, :F], out_flat[:M, Fp:Fp + F]], axis=-1)
    return jnp.transpose(out2f.reshape(N, H, W, 2 * F), (0, 3, 1, 2))


def init_params(key, c1, c2, f):
    """Deterministic synthetic params. Conv has no bias (norm follows); BN
    (inference) is folded into per-channel scale/bias."""
    ks = jax.random.split(key, 10)
    eps = 1e-5

    def bn_fold(kg, kb, km, kv):
        gamma = 1.0 + 0.1 * jax.random.normal(kg, (f,), jnp.float32)
        beta = 0.1 * jax.random.normal(kb, (f,), jnp.float32)
        mean = 0.1 * jax.random.normal(km, (f,), jnp.float32)
        var = 1.0 + 0.1 * jnp.abs(jax.random.normal(kv, (f,), jnp.float32))
        scale = gamma / jnp.sqrt(var + eps)
        bias = beta - mean * scale
        return scale.reshape(1, f), bias.reshape(1, f)

    w_left = 0.1 * jax.random.normal(ks[0], (c1, f), jnp.float32)
    w_right = 0.1 * jax.random.normal(ks[1], (c2, f), jnp.float32)
    sl, bl = bn_fold(ks[2], ks[3], ks[4], ks[5])
    sr, br = bn_fold(ks[6], ks[7], ks[8], ks[9])
    return {"w_left": w_left, "scale_left": sl, "bias_left": bl,
            "w_right": w_right, "scale_right": sr, "bias_right": br}


def reference(x2, x1, params):
    """Plain-JAX NCHW reference mirroring the PyTorch forward."""
    N, C2, H2, W2 = x1.shape
    # left
    left = jnp.einsum("nchw,cf->nfhw", x2, params["w_left"])
    left = left * params["scale_left"].reshape(1, -1, 1, 1) + \
        params["bias_left"].reshape(1, -1, 1, 1)
    left = jnp.maximum(left, 0.0)
    # right: maxpool 2x2 stride 2 (even dims -> ceil_mode irrelevant)
    pooled = x1.reshape(N, C2, H2 // 2, 2, W2 // 2, 2).max(axis=(3, 5))
    right = jnp.einsum("nchw,cf->nfhw", pooled, params["w_right"])
    right = right * params["scale_right"].reshape(1, -1, 1, 1) + \
        params["bias_right"].reshape(1, -1, 1, 1)
    right = jnp.maximum(right, 0.0)
    return jnp.concatenate([left, right], axis=1)


if __name__ == "__main__":
    key = jax.random.PRNGKey(0)
    k_x2, k_x1, k_p = jax.random.split(key, 3)

    N, C1, C2, F = 2, 4, 6, 8
    H = W = 8                              # x2 spatial; x1 is 2H x 2W
    x2 = jax.random.normal(k_x2, (N, C1, H, W), jnp.float32)
    x1 = jax.random.normal(k_x1, (N, C2, 2 * H, 2 * W), jnp.float32)
    params = init_params(k_p, C1, C2, F)

    # (compute_dtype=jnp.bfloat16 recommended on v6e/v7x; f32 here for checking)
    out = transition_forward(x2, x1, params, tile_m=512)
    out = jax.block_until_ready(out)

    ref = reference(x2, x1, params)
    assert out.shape == (N, 2 * F, H, W), out.shape
    assert jnp.allclose(out, ref, rtol=1e-5, atol=1e-4), \
        float(jnp.max(jnp.abs(out - ref)))

    print("KERNEL_OK")
</pallas_src>

<mosaic_0001>
module attributes {stable_mosaic.version = 11 : i64} {
  func.func @transition_kernel(%arg0: i32, %arg1: memref<128x4xf32, #tpu.memory_space<vmem>>, %arg2: memref<4x128x6xf32, #tpu.memory_space<vmem>>, %arg3: memref<4x128xf32, #tpu.memory_space<vmem>>, %arg4: memref<1x128xf32, #tpu.memory_space<vmem>>, %arg5: memref<1x128xf32, #tpu.memory_space<vmem>>, %arg6: memref<6x128xf32, #tpu.memory_space<vmem>>, %arg7: memref<1x128xf32, #tpu.memory_space<vmem>>, %arg8: memref<1x128xf32, #tpu.memory_space<vmem>>, %arg9: memref<128x256xf32, #tpu.memory_space<vmem>>) attributes {dimension_semantics = [#tpu.dimension_semantics<parallel>], iteration_bounds = array<i64: 1>, scalar_prefetch = 0 : i64, scratch_operands = 0 : i64, tpu.core_type = #tpu.core_type<tc>, window_params = [{transform_indices = @transform_0, window_bounds = array<i64: 128, 4>}, {transform_indices = @transform_1, window_bounds = array<i64: 4, 128, 6>}, {pipeline_mode = #tpu.pipeline_mode<synchronous>, transform_indices = @transform_2, window_bounds = array<i64: 4, 128>}, {pipeline_mode = #tpu.pipeline_mode<synchronous>, transform_indices = @transform_3, window_bounds = array<i64: 1, 128>}, {pipeline_mode = #tpu.pipeline_mode<synchronous>, transform_indices = @transform_4, window_bounds = array<i64: 1, 128>}, {pipeline_mode = #tpu.pipeline_mode<synchronous>, transform_indices = @transform_5, window_bounds = array<i64: 6, 128>}, {pipeline_mode = #tpu.pipeline_mode<synchronous>, transform_indices = @transform_6, window_bounds = array<i64: 1, 128>}, {pipeline_mode = #tpu.pipeline_mode<synchronous>, transform_indices = @transform_7, window_bounds = array<i64: 1, 128>}, {transform_indices = @transform_8, window_bounds = array<i64: 128, 256>}]} {
    %c0 = arith.constant 0 : index
    %c0_0 = arith.constant 0 : index
    %0 = vector.load %arg1[%c0, %c0_0] : memref<128x4xf32, #tpu.memory_space<vmem>>, vector<128x4xf32>
    %c0_1 = arith.constant 0 : index
    %c0_2 = arith.constant 0 : index
    %1 = vector.load %arg3[%c0_1, %c0_2] : memref<4x128xf32, #tpu.memory_space<vmem>>, vector<4x128xf32>
    %cst = arith.constant dense<0.000000e+00> : vector<128x128xf32>
    %2 = tpu.matmul %0, %1, %cst {dimension_numbers = #tpu.dot_dimension_numbers<[1], [0], [0], [1], [0, 0, 1, 1], [], []>} : vector<128x4xf32>, vector<4x128xf32>, vector<128x128xf32> -> vector<128x128xf32>
    %c0_3 = arith.constant 0 : index
    %c0_4 = arith.constant 0 : index
    %3 = vector.load %arg4[%c0_3, %c0_4] : memref<1x128xf32, #tpu.memory_space<vmem>>, vector<1x128xf32>
    %4 = vector.broadcast %3 : vector<1x128xf32> to vector<128x128xf32>
    %5 = arith.mulf %2, %4 : vector<128x128xf32>
    %c0_5 = arith.constant 0 : index
    %c0_6 = arith.constant 0 : index
    %6 = vector.load %arg5[%c0_5, %c0_6] : memref<1x128xf32, #tpu.memory_space<vmem>>, vector<1x128xf32>
    %7 = vector.broadcast %6 : vector<1x128xf32> to vector<128x128xf32>
    %8 = arith.addf %5, %7 : vector<128x128xf32>
    %cst_7 = arith.constant 0.000000e+00 : f32
    %9 = vector.broadcast %cst_7 : f32 to vector<128x128xf32>
    %10 = arith.maximumf %8, %9 : vector<128x128xf32>
    %c0_8 = arith.constant 0 : index
    %c0_9 = arith.constant 0 : index
    %11 = vector.load %arg9[%c0_8, %c0_9] : memref<128x256xf32, #tpu.memory_space<vmem>>, vector<128x128xf32>
    tpu.vector_store %arg9[%c0_8, %c0_9], %10 {strides = array<i32>} : memref<128x256xf32, #tpu.memory_space<vmem>>, vector<128x128xf32>,
    %c0_10 = arith.constant 0 : index
    %c0_11 = arith.constant 0 : index
    %c0_12 = arith.constant 0 : index
    %12 = vector.load %arg2[%c0_10, %c0_11, %c0_12] : memref<4x128x6xf32, #tpu.memory_space<vmem>>, vector<4x128x6xf32>
    %cst_13 = arith.constant dense<0xFF800000> : vector<128x6xf32>
    %13 = vector.multi_reduction <maximumf>, %12, %cst_13 [0] : vector<4x128x6xf32> to vector<128x6xf32>
    %c0_14 = arith.constant 0 : index
    %c0_15 = arith.constant 0 : index
    %14 = vector.load %arg6[%c0_14, %c0_15] : memref<6x128xf32, #tpu.memory_space<vmem>>, vector<6x128xf32>
    %cst_16 = arith.constant dense<0.000000e+00> : vector<128x128xf32>
    %15 = tpu.matmul %13, %14, %cst_16 {dimension_numbers = #tpu.dot_dimension_numbers<[1], [0], [0], [1], [0, 0, 1, 1], [], []>} : vector<128x6xf32>, vector<6x128xf32>, vector<128x128xf32> -> vector<128x128xf32>
    %c0_17 = arith.constant 0 : index
    %c0_18 = arith.constant 0 : index
    %16 = vector.load %arg7[%c0_17, %c0_18] : memref<1x128xf32, #tpu.memory_space<vmem>>, vector<1x128xf32>
    %17 = vector.broadcast %16 : vector<1x128xf32> to vector<128x128xf32>
    %18 = arith.mulf %15, %17 : vector<128x128xf32>
    %c0_19 = arith.constant 0 : index
    %c0_20 = arith.constant 0 : index
    %19 = vector.load %arg8[%c0_19, %c0_20] : memref<1x128xf32, #tpu.memory_space<vmem>>, vector<1x128xf32>
    %20 = vector.broadcast %19 : vector<1x128xf32> to vector<128x128xf32>
    %21 = arith.addf %18, %20 : vector<128x128xf32>
    %cst_21 = arith.constant 0.000000e+00 : f32
    %22 = vector.broadcast %cst_21 : f32 to vector<128x128xf32>
    %23 = arith.maximumf %21, %22 : vector<128x128xf32>
    %c0_22 = arith.constant 0 : index
    %c128 = arith.constant 128 : index
    %24 = vector.load %arg9[%c0_22, %c128] : memref<128x256xf32, #tpu.memory_space<vmem>>, vector<128x128xf32>
    tpu.vector_store %arg9[%c0_22, %c128], %23 {strides = array<i32>} : memref<128x256xf32, #tpu.memory_space<vmem>>, vector<128x128xf32>,
    return
  }
  func.func @transform_0(%arg0: i32) -> (i32, i32) {
    %c0_i32 = arith.constant 0 : i32
    %c0_i32_0 = arith.constant 0 : i32
    return %arg0, %c0_i32 : i32, i32
  }
  func.func @transform_1(%arg0: i32) -> (i32, i32, i32) {
    %c0_i32 = arith.constant 0 : i32
    %c0_i32_0 = arith.constant 0 : i32
    %c0_i32_1 = arith.constant 0 : i32
    return %c0_i32, %arg0, %c0_i32_0 : i32, i32, i32
  }
  func.func @transform_2(%arg0: i32) -> (i32, i32) {
    %c0_i32 = arith.constant 0 : i32
    %c0_i32_0 = arith.constant 0 : i32
    %c0_i32_1 = arith.constant 0 : i32
    return %c0_i32, %c0_i32_0 : i32, i32
  }
  func.func @transform_3(%arg0: i32) -> (i32, i32) {
    %c0_i32 = arith.constant 0 : i32
    %c0_i32_0 = arith.constant 0 : i32
    %c0_i32_1 = arith.constant 0 : i32
    return %c0_i32, %c0_i32_0 : i32, i32
  }
  func.func @transform_4(%arg0: i32) -> (i32, i32) {
    %c0_i32 = arith.constant 0 : i32
    %c0_i32_0 = arith.constant 0 : i32
    %c0_i32_1 = arith.constant 0 : i32
    return %c0_i32, %c0_i32_0 : i32, i32
  }
  func.func @transform_5(%arg0: i32) -> (i32, i32) {
    %c0_i32 = arith.constant 0 : i32
    %c0_i32_0 = arith.constant 0 : i32
    %c0_i32_1 = arith.constant 0 : i32
    return %c0_i32, %c0_i32_0 : i32, i32
  }
  func.func @transform_6(%arg0: i32) -> (i32, i32) {
    %c0_i32 = arith.constant 0 : i32
    %c0_i32_0 = arith.constant 0 : i32
    %c0_i32_1 = arith.constant 0 : i32
    return %c0_i32, %c0_i32_0 : i32, i32
  }
  func.func @transform_7(%arg0: i32) -> (i32, i32) {
    %c0_i32 = arith.constant 0 : i32
    %c0_i32_0 = arith.constant 0 : i32
    %c0_i32_1 = arith.constant 0 : i32
    return %c0_i32, %c0_i32_0 : i32, i32
  }
  func.func @transform_8(%arg0: i32) -> (i32, i32) {
    %c0_i32 = arith.constant 0 : i32
    %c0_i32_0 = arith.constant 0 : i32
    return %arg0, %c0_i32 : i32, i32
  }
}

</mosaic_0001>

<llo_original>
// kernel: tpu_custom_call.1
$region0: #{tpu_custom_call.1}
  #allocation0 [shape = 'u32[]', space=smem, size = 0x4, offset = 0x4, fixed_abs, tag = 'smem constant byte address 0x4 - core index']
  #allocation1 [shape = 'u32[144,128]{1,0:T(1,128)}', space=vmem, size = 0x12000, scoped, tag = 'internal scratch']
  %s0 = inlined_call_operand.vmem [shape: f32[128,4], index: 0, kind: input, shape index: {}]
  %s1 = inlined_call_operand.vmem [shape: f32[4,128,6], index: 1, kind: input, shape index: {}]
  %s2 = inlined_call_operand.vmem [shape: f32[4,128], index: 2, kind: input, shape index: {}]
  %s3 = inlined_call_operand.vmem [shape: f32[1,128], index: 3, kind: input, shape index: {}]
  %s4 = inlined_call_operand.vmem [shape: f32[1,128], index: 4, kind: input, shape index: {}]
  %s5 = inlined_call_operand.vmem [shape: f32[6,128], index: 5, kind: input, shape index: {}]
  %s6 = inlined_call_operand.vmem [shape: f32[1,128], index: 6, kind: input, shape index: {}]
  %s7 = inlined_call_operand.vmem [shape: f32[1,128], index: 7, kind: input, shape index: {}]
  %s8 = inlined_call_operand.hbm [shape: f32[128,256], index: 8, kind: output, shape index: {}]
  %s9 = sld [smem:[#allocation0]]
  $region42: #{tpu_custom_call.1} parent=0
    _
  %s11 = ssub.s32 1, %s9
  %s12 = scalar_select 0, %s11, %s9
  $region1: #{tpu_custom_call.1} parent=0
    #allocation2 [shape = 'u8[131072]{0}', space=vmem, size = 0x20000, scoped, tag = 'output window, operand 0, single buffered']
    #allocation3 [shape = 's32[1]{0}', space=sflag, size = 0x4, scoped, tag = 'scoped memory for tpu_custom_call.1']
    %13 = vsyncpa [#allocation3], 0
    // Predicated region
    $region2: #{tpu_custom_call.1} parent=1 // pred_check
      _
    $region3: #{tpu_custom_call.1} parent=1 // pred_check_branch
      %15 = sbr.rel (0) target = $region5
    $region4: #{tpu_custom_call.1} parent=1 // pred_region
      _
    $region5: #{tpu_custom_call.1} parent=1 // pred_fallthru
      _
    // Predicated region
    $region6: #{tpu_custom_call.1} parent=1 // pred_check
      _
    $region7: #{tpu_custom_call.1} parent=1 // pred_check_branch
      %17 = sbr.rel (0) target = $region9
    $region8: #{tpu_custom_call.1} parent=1 // pred_region
      _
    $region9: #{tpu_custom_call.1} parent=1 // pred_fallthru
      _
    // Predicated region
    $region10: #{tpu_custom_call.1} parent=1 // pred_check
      _
    $region11: #{tpu_custom_call.1} parent=1 // pred_check_branch
      %19 = sbr.rel (0) target = $region13
    $region12: #{tpu_custom_call.1} parent=1 // pred_region
      _
    $region13: #{tpu_custom_call.1} parent=1 // pred_fallthru
      _
    // Predicated region
    $region14: #{tpu_custom_call.1} parent=1 // pred_check
      _
    $region15: #{tpu_custom_call.1} parent=1 // pred_check_branch
      %21 = sbr.rel (0) target = $region17
    $region16: #{tpu_custom_call.1} parent=1 // pred_region
      _
    $region17: #{tpu_custom_call.1} parent=1 // pred_fallthru
      _
    // Predicated region
    $region18: #{tpu_custom_call.1} parent=1 // pred_check
      _
    $region19: #{tpu_custom_call.1} parent=1 // pred_check_branch
      %23 = sbr.rel (0) target = $region21
    $region20: #{tpu_custom_call.1} parent=1 // pred_region
      _
    $region21: #{tpu_custom_call.1} parent=1 // pred_fallthru
      _
    // Predicated region
    $region22: #{tpu_custom_call.1} parent=1 // pred_check
      _
    $region23: #{tpu_custom_call.1} parent=1 // pred_check_branch
      %25 = sbr.rel (0) target = $region25
    $region24: #{tpu_custom_call.1} parent=1 // pred_region
      _
    $region25: #{tpu_custom_call.1} parent=1 // pred_fallthru
      _
    // Predicated region
    $region26: #{tpu_custom_call.1} parent=1 // pred_check
      _
    $region27: #{tpu_custom_call.1} parent=1 // pred_check_branch
      %27 = sbr.rel (0) target = $region29
    $region28: #{tpu_custom_call.1} parent=1 // pred_region
      _
    $region29: #{tpu_custom_call.1} parent=1 // pred_fallthru
      _
    // Predicated region
    $region30: #{tpu_custom_call.1} parent=1 // pred_check
      _
    $region31: #{tpu_custom_call.1} parent=1 // pred_check_branch
      %29 = sbr.rel (0) target = $region33
    $region32: #{tpu_custom_call.1} parent=1 // pred_region
      _
    $region33: #{tpu_custom_call.1} parent=1 // pred_fallthru
      _
    %v30 = vld [vmem:[%s0] sm:$0xff]
    %v31 = vld [vmem:[%s0 + $0x8] sm:$0xff]
    %v32 = vld [vmem:[%s0 + $0x10] sm:$0xff]
    %v33 = vld [vmem:[%s0 + $0x18] sm:$0xff]
    %v34 = vld [vmem:[%s0 + $0x20] sm:$0xff]
    %v35 = vld [vmem:[%s0 + $0x28] sm:$0xff]
    %v36 = vld [vmem:[%s0 + $0x30] sm:$0xff]
    %v37 = vld [vmem:[%s0 + $0x38] sm:$0xff]
    %v38 = vld [vmem:[%s0 + $0x40] sm:$0xff]
    %v39 = vld [vmem:[%s0 + $0x48] sm:$0xff]
    %v40 = vld [vmem:[%s0 + $0x50] sm:$0xff]
    %v41 = vld [vmem:[%s0 + $0x58] sm:$0xff]
    %v42 = vld [vmem:[%s0 + $0x60] sm:$0xff]
    %v43 = vld [vmem:[%s0 + $0x68] sm:$0xff]
    %v44 = vld [vmem:[%s0 + $0x70] sm:$0xff]
    %v45 = vld [vmem:[%s0 + $0x78] sm:$0xff]
    %v46 = vld [vmem:[%s2] sm:$0xf]
    %vm47 = vcmask 31744
    %v49 = vsel %vm47, %v30, 0
    %v52 = vsel %vm47, %v31, 0
    %v55 = vsel %vm47, %v32, 0
    %v58 = vsel %vm47, %v33, 0
    %v61 = vsel %vm47, %v34, 0
    %v64 = vsel %vm47, %v35, 0
    %v67 = vsel %vm47, %v36, 0
    %v70 = vsel %vm47, %v37, 0
    %v73 = vsel %vm47, %v38, 0
    %v76 = vsel %vm47, %v39, 0
    %v79 = vsel %vm47, %v40, 0
    %v82 = vsel %vm47, %v41, 0
    %v85 = vsel %vm47, %v42, 0
    %v88 = vsel %vm47, %v43, 0
    %v91 = vsel %vm47, %v44, 0
    %v94 = vsel %vm47, %v45, 0
    %vm96 = vcmask 1043456
    %v98 = vsel %vm96, %v46, 0
    %100 = vmatprep.subr.mxu0 0.0
    %101 = vmatpush1.msra.mxu0 0.0
    %102 = vmatprep.subr.mxu0 0.0
    %103 = vmatpush1.msra.mxu0 0.0
    %104 = vmatprep.subr.mxu0 0.0
    %105 = vmatpush1.msra.mxu0 0.0
    %106 = vmatprep.subr.mxu0 0.0
    %107 = vmatpush1.msra.mxu0 0.0
    %108 = vmatprep.subr.mxu0 0.0
    %109 = vmatpush1.msra.mxu0 0.0
    %110 = vmatprep.subr.mxu0 0.0
    %111 = vmatpush1.msra.mxu0 0.0
    %112 = vmatprep.subr.mxu0 0.0
    %113 = vmatpush1.msra.mxu0 0.0
    %114 = vmatprep.subr.mxu0 0.0
    %115 = vmatpush1.msra.mxu0 0.0
    %116 = vmatprep.subr.mxu0 0.0
    %117 = vmatpush1.msra.mxu0 0.0
    %118 = vmatprep.subr.mxu0 0.0
    %119 = vmatpush1.msra.mxu0 0.0
    %120 = vmatprep.subr.mxu0 0.0
    %121 = vmatpush1.msra.mxu0 0.0
    %122 = vmatprep.subr.mxu0 0.0
    %123 = vmatpush1.msra.mxu0 0.0
    %124 = vmatprep.subr.mxu0 0.0
    %125 = vmatpush1.msra.mxu0 0.0
    %126 = vmatprep.subr.mxu0 0.0
    %127 = vmatpush1.msra.mxu0 0.0
    %128 = vmatprep.subr.mxu0 0.0
    %129 = vmatpush1.msra.mxu0 0.0
    %130 = vmatprep.subr.mxu0 0.0
    %131 = vmatpush1.msra.mxu0 %v98
    %132 = vmatprep.subr.mxu0 0.0
    %133 = vmatpush2.msra.mxu0 0.0
    %134 = vmatprep.subr.mxu0 0.0
    %135 = vmatpush2.msra.mxu0 0.0
    %136 = vmatprep.subr.mxu0 0.0
    %137 = vmatpush2.msra.mxu0 0.0
    %138 = vmatprep.subr.mxu0 0.0
    %139 = vmatpush2.msra.mxu0 0.0
    %140 = vmatprep.subr.mxu0 0.0
    %141 = vmatpush2.msra.mxu0 0.0
    %142 = vmatprep.subr.mxu0 0.0
    %143 = vmatpush2.msra.mxu0 0.0
    %144 = vmatprep.subr.mxu0 0.0
    %145 = vmatpush2.msra.mxu0 0.0
    %146 = vmatprep.subr.mxu0 0.0
    %147 = vmatpush2.msra.mxu0 0.0
    %148 = vmatprep.subr.mxu0 0.0
    %149 = vmatpush2.msra.mxu0 0.0
    %150 = vmatprep.subr.mxu0 0.0
    %151 = vmatpush2.msra.mxu0 0.0
    %152 = vmatprep.subr.mxu0 0.0
    %153 = vmatpush2.msra.mxu0 0.0
    %154 = vmatprep.subr.mxu0 0.0
    %155 = vmatpush2.msra.mxu0 0.0
    %156 = vmatprep.subr.mxu0 0.0
    %157 = vmatpush2.msra.mxu0 0.0
    %158 = vmatprep.subr.mxu0 0.0
    %159 = vmatpush2.msra.mxu0 0.0
    %160 = vmatprep.subr.mxu0 0.0
    %161 = vmatpush2.msra.mxu0 0.0
    %162 = vmatprep.subr.mxu0 0.0
    %163 = vmatpush2.msra.mxu0 0.0
    %164 = vmatprep.mubr.f32.mxu0 0.0
    %165 = vmatmul.mubr.f32.gmra.mxu0 %v49
    %v166 = vpop.f32.mrf.mxu0
    %v167 = vadd.f32 0.0, %v166
    %v168 = vpop.f32.mrf.mxu0
    %169 = vmatprep.mubr.f32.mxu0 0.0
    %170 = vmatmul.mubr.f32.gmra.mxu0 %v52
    %v171 = vpop.f32.mrf.mxu0
    %v172 = vadd.f32 0.0, %v171
    %v173 = vpop.f32.mrf.mxu0
    %174 = vmatprep.mubr.f32.mxu0 0.0
    %175 = vmatmul.mubr.f32.gmra.mxu0 %v55
    %v176 = vpop.f32.mrf.mxu0
    %v177 = vadd.f32 0.0, %v176
    %v178 = vpop.f32.mrf.mxu0
    %179 = vmatprep.mubr.f32.mxu0 0.0
    %180 = vmatmul.mubr.f32.gmra.mxu0 %v58
    %v181 = vpop.f32.mrf.mxu0
    %v182 = vadd.f32 0.0, %v181
    %v183 = vpop.f32.mrf.mxu0
    %184 = vmatprep.mubr.f32.mxu0 0.0
    %185 = vmatmul.mubr.f32.gmra.mxu0 %v61
    %v186 = vpop.f32.mrf.mxu0
    %v187 = vadd.f32 0.0, %v186
    %v188 = vpop.f32.mrf.mxu0
    %189 = vmatprep.mubr.f32.mxu0 0.0
    %190 = vmatmul.mubr.f32.gmra.mxu0 %v64
    %v191 = vpop.f32.mrf.mxu0
    %v192 = vadd.f32 0.0, %v191
    %v193 = vpop.f32.mrf.mxu0
    %194 = vmatprep.mubr.f32.mxu0 0.0
    %195 = vmatmul.mubr.f32.gmra.mxu0 %v67
    %v196 = vpop.f32.mrf.mxu0
    %v197 = vadd.f32 0.0, %v196
    %v198 = vpop.f32.mrf.mxu0
    %199 = vmatprep.mubr.f32.mxu0 0.0
    %200 = vmatmul.mubr.f32.gmra.mxu0 %v70
    %v201 = vpop.f32.mrf.mxu0
    %v202 = vadd.f32 0.0, %v201
    %v203 = vpop.f32.mrf.mxu0
    %204 = vmatprep.mubr.f32.mxu0 0.0
    %205 = vmatmul.mubr.f32.gmra.mxu0 %v73
    %v206 = vpop.f32.mrf.mxu0
    %v207 = vadd.f32 0.0, %v206
    %v208 = vpop.f32.mrf.mxu0
    %209 = vmatprep.mubr.f32.mxu0 0.0
    %210 = vmatmul.mubr.f32.gmra.mxu0 %v76
    %v211 = vpop.f32.mrf.mxu0
    %v212 = vadd.f32 0.0, %v211
    %v213 = vpop.f32.mrf.mxu0
    %214 = vmatprep.mubr.f32.mxu0 0.0
    %215 = vmatmul.mubr.f32.gmra.mxu0 %v79
    %v216 = vpop.f32.mrf.mxu0
    %v217 = vadd.f32 0.0, %v216
    %v218 = vpop.f32.mrf.mxu0
    %219 = vmatprep.mubr.f32.mxu0 0.0
    %220 = vmatmul.mubr.f32.gmra.mxu0 %v82
    %v221 = vpop.f32.mrf.mxu0
    %v222 = vadd.f32 0.0, %v221
    %v223 = vpop.f32.mrf.mxu0
    %224 = vmatprep.mubr.f32.mxu0 0.0
    %225 = vmatmul.mubr.f32.gmra.mxu0 %v85
    %v226 = vpop.f32.mrf.mxu0
    %v227 = vadd.f32 0.0, %v226
    %v228 = vpop.f32.mrf.mxu0
    %229 = vmatprep.mubr.f32.mxu0 0.0
    %230 = vmatmul.mubr.f32.gmra.mxu0 %v88
    %v231 = vpop.f32.mrf.mxu0
    %v232 = vadd.f32 0.0, %v231
    %v233 = vpop.f32.mrf.mxu0
    %234 = vmatprep.mubr.f32.mxu0 0.0
    %235 = vmatmul.mubr.f32.gmra.mxu0 %v91
    %v236 = vpop.f32.mrf.mxu0
    %v237 = vadd.f32 0.0, %v236
    %v238 = vpop.f32.mrf.mxu0
    %239 = vmatprep.mubr.f32.mxu0 0.0
    %240 = vmatmul.mubr.f32.gmra.mxu0 %v94
    %v241 = vpop.f32.mrf.mxu0
    %v242 = vadd.f32 0.0, %v241
    %v243 = vpop.f32.mrf.mxu0
    %244 = vdwg.mxu0
    %v245 = vld [vmem:[%s3] sm:$0x1]
    %v247 = vlaneseq
    %v248 = vshrl.u32 %v247, 7
    %v249 = vsub.s32 0, %v248
    %v250 = vrot.slane %v245, %v249
    %v252 = vmul.f32 %v167, %v250
    %v253 = vmul.f32 %v172, %v250
    %v254 = vmul.f32 %v177, %v250
    %v255 = vmul.f32 %v182, %v250
    %v256 = vmul.f32 %v187, %v250
    %v257 = vmul.f32 %v192, %v250
    %v258 = vmul.f32 %v197, %v250
    %v259 = vmul.f32 %v202, %v250
    %v260 = vmul.f32 %v207, %v250
    %v261 = vmul.f32 %v212, %v250
    %v262 = vmul.f32 %v217, %v250
    %v263 = vmul.f32 %v222, %v250
    %v264 = vmul.f32 %v227, %v250
    %v265 = vmul.f32 %v232, %v250
    %v266 = vmul.f32 %v237, %v250
    %v267 = vmul.f32 %v242, %v250
    %v268 = vld [vmem:[%s4] sm:$0x1]
    %v270 = vlaneseq
    %v271 = vshrl.u32 %v270, 7
    %v272 = vsub.s32 0, %v271
    %v273 = vrot.slane %v268, %v272
    %v275 = vadd.f32 %v252, %v273
    %v276 = vadd.f32 %v253, %v273
    %v277 = vadd.f32 %v254, %v273
    %v278 = vadd.f32 %v255, %v273
    %v279 = vadd.f32 %v256, %v273
    %v280 = vadd.f32 %v257, %v273
    %v281 = vadd.f32 %v258, %v273
    %v282 = vadd.f32 %v259, %v273
    %v283 = vadd.f32 %v260, %v273
    %v284 = vadd.f32 %v261, %v273
    %v285 = vadd.f32 %v262, %v273
    %v286 = vadd.f32 %v263, %v273
    %v287 = vadd.f32 %v264, %v273
    %v288 = vadd.f32 %v265, %v273
    %v289 = vadd.f32 %v266, %v273
    %v290 = vadd.f32 %v267, %v273
    %v291 = vmax.f32 %v275, 0.0
    %v292 = vmax.f32 %v276, 0.0
    %v293 = vmax.f32 %v277, 0.0
    %v294 = vmax.f32 %v278, 0.0
    %v295 = vmax.f32 %v279, 0.0
    %v296 = vmax.f32 %v280, 0.0
    %v297 = vmax.f32 %v281, 0.0
    %v298 = vmax.f32 %v282, 0.0
    %v299 = vmax.f32 %v283, 0.0
    %v300 = vmax.f32 %v284, 0.0
    %v301 = vmax.f32 %v285, 0.0
    %v302 = vmax.f32 %v286, 0.0
    %v303 = vmax.f32 %v287, 0.0
    %v304 = vmax.f32 %v288, 0.0
    %v305 = vmax.f32 %v289, 0.0
    %v306 = vmax.f32 %v290, 0.0
    %307 = vst [vmem:[#allocation2] sm:$0xff] %v291
    %308 = vst [vmem:[#allocation2 + $0x10] sm:$0xff] %v292
    %309 = vst [vmem:[#allocation2 + $0x20] sm:$0xff] %v293
    %310 = vst [vmem:[#allocation2 + $0x30] sm:$0xff] %v294
    %311 = vst [vmem:[#allocation2 + $0x40] sm:$0xff] %v295
    %312 = vst [vmem:[#allocation2 + $0x50] sm:$0xff] %v296
    %313 = vst [vmem:[#allocation2 + $0x60] sm:$0xff] %v297
    %314 = vst [vmem:[#allocation2 + $0x70] sm:$0xff] %v298
    %315 = vst [vmem:[#allocation2 + $0x80] sm:$0xff] %v299
    %316 = vst [vmem:[#allocation2 + $0x90] sm:$0xff] %v300
    %317 = vst [vmem:[#allocation2 + $0xa0] sm:$0xff] %v301
    %318 = vst [vmem:[#allocation2 + $0xb0] sm:$0xff] %v302
    %319 = vst [vmem:[#allocation2 + $0xc0] sm:$0xff] %v303
    %320 = vst [vmem:[#allocation2 + $0xd0] sm:$0xff] %v304
    %321 = vst [vmem:[#allocation2 + $0xe0] sm:$0xff] %v305
    %322 = vst [vmem:[#allocation2 + $0xf0] sm:$0xff] %v306
    %v323 = vld [vmem:[%s1] sm:$0xff]
    %v324 = vld [vmem:[%s1 + $0x8] sm:$0xff]
    %v325 = vld [vmem:[%s1 + $0x10] sm:$0xff]
    %v326 = vld [vmem:[%s1 + $0x18] sm:$0xff]
    %v327 = vld [vmem:[%s1 + $0x20] sm:$0xff]
    %v328 = vld [vmem:[%s1 + $0x28] sm:$0xff]
    %v329 = vld [vmem:[%s1 + $0x30] sm:$0xff]
    %v330 = vld [vmem:[%s1 + $0x38] sm:$0xff]
    %v331 = vld [vmem:[%s1 + $0x40] sm:$0xff]
    %v332 = vld [vmem:[%s1 + $0x48] sm:$0xff]
    %v333 = vld [vmem:[%s1 + $0x50] sm:$0xff]
    %v334 = vld [vmem:[%s1 + $0x58] sm:$0xff]
    %v335 = vld [vmem:[%s1 + $0x60] sm:$0xff]
    %v336 = vld [vmem:[%s1 + $0x68] sm:$0xff]
    %v337 = vld [vmem:[%s1 + $0x70] sm:$0xff]
    %v338 = vld [vmem:[%s1 + $0x78] sm:$0xff]
    %v339 = vld [vmem:[%s1 + $0x80] sm:$0xff]
    %v340 = vld [vmem:[%s1 + $0x88] sm:$0xff]
    %v341 = vld [vmem:[%s1 + $0x90] sm:$0xff]
    %v342 = vld [vmem:[%s1 + $0x98] sm:$0xff]
    %v343 = vld [vmem:[%s1 + $0xa0] sm:$0xff]
    %v344 = vld [vmem:[%s1 + $0xa8] sm:$0xff]
    %v345 = vld [vmem:[%s1 + $0xb0] sm:$0xff]
    %v346 = vld [vmem:[%s1 + $0xb8] sm:$0xff]
    %v347 = vld [vmem:[%s1 + $0xc0] sm:$0xff]
    %v348 = vld [vmem:[%s1 + $0xc8] sm:$0xff]
    %v349 = vld [vmem:[%s1 + $0xd0] sm:$0xff]
    %v350 = vld [vmem:[%s1 + $0xd8] sm:$0xff]
    %v351 = vld [vmem:[%s1 + $0xe0] sm:$0xff]
    %v352 = vld [vmem:[%s1 + $0xe8] sm:$0xff]
    %v353 = vld [vmem:[%s1 + $0xf0] sm:$0xff]
    %v354 = vld [vmem:[%s1 + $0xf8] sm:$0xff]
    %v355 = vld [vmem:[%s1 + $0x100] sm:$0xff]
    %v356 = vld [vmem:[%s1 + $0x108] sm:$0xff]
    %v357 = vld [vmem:[%s1 + $0x110] sm:$0xff]
    %v358 = vld [vmem:[%s1 + $0x118] sm:$0xff]
    %v359 = vld [vmem:[%s1 + $0x120] sm:$0xff]
    %v360 = vld [vmem:[%s1 + $0x128] sm:$0xff]
    %v361 = vld [vmem:[%s1 + $0x130] sm:$0xff]
    %v362 = vld [vmem:[%s1 + $0x138] sm:$0xff]
    %v363 = vld [vmem:[%s1 + $0x140] sm:$0xff]
    %v364 = vld [vmem:[%s1 + $0x148] sm:$0xff]
    %v365 = vld [vmem:[%s1 + $0x150] sm:$0xff]
    %v366 = vld [vmem:[%s1 + $0x158] sm:$0xff]
    %v367 = vld [vmem:[%s1 + $0x160] sm:$0xff]
    %v368 = vld [vmem:[%s1 + $0x168] sm:$0xff]
    %v369 = vld [vmem:[%s1 + $0x170] sm:$0xff]
    %v370 = vld [vmem:[%s1 + $0x178] sm:$0xff]
    %v371 = vld [vmem:[%s1 + $0x180] sm:$0xff]
    %v372 = vld [vmem:[%s1 + $0x188] sm:$0xff]
    %v373 = vld [vmem:[%s1 + $0x190] sm:$0xff]
    %v374 = vld [vmem:[%s1 + $0x198] sm:$0xff]
    %v375 = vld [vmem:[%s1 + $0x1a0] sm:$0xff]
    %v376 = vld [vmem:[%s1 + $0x1a8] sm:$0xff]
    %v377 = vld [vmem:[%s1 + $0x1b0] sm:$0xff]
    %v378 = vld [vmem:[%s1 + $0x1b8] sm:$0xff]
    %v379 = vld [vmem:[%s1 + $0x1c0] sm:$0xff]
    %v380 = vld [vmem:[%s1 + $0x1c8] sm:$0xff]
    %v381 = vld [vmem:[%s1 + $0x1d0] sm:$0xff]
    %v382 = vld [vmem:[%s1 + $0x1d8] sm:$0xff]
    %v383 = vld [vmem:[%s1 + $0x1e0] sm:$0xff]
    %v384 = vld [vmem:[%s1 + $0x1e8] sm:$0xff]
    %v385 = vld [vmem:[%s1 + $0x1f0] sm:$0xff]
    %v386 = vld [vmem:[%s1 + $0x1f8] sm:$0xff]
    %vm387 = vcmask 48128
    %v388 = vsel %vm387, %v323, -inf
    %v389 = vsel %vm387, %v339, -inf
    %v390 = vmax.f32 %v388, %v389
    %v391 = vsel %vm387, %v355, -inf
    %v392 = vmax.f32 %v390, %v391
    %v393 = vsel %vm387, %v371, -inf
    %v394 = vmax.f32 %v392, %v393
    %v395 = vsel %vm387, %v324, -inf
    %v396 = vsel %vm387, %v340, -inf
    %v397 = vmax.f32 %v395, %v396
    %v398 = vsel %vm387, %v356, -inf
    %v399 = vmax.f32 %v397, %v398
    %v400 = vsel %vm387, %v372, -inf
    %v401 = vmax.f32 %v399, %v400
    %v402 = vsel %vm387, %v325, -inf
    %v403 = vsel %vm387, %v341, -inf
    %v404 = vmax.f32 %v402, %v403
    %v405 = vsel %vm387, %v357, -inf
    %v406 = vmax.f32 %v404, %v405
    %v407 = vsel %vm387, %v373, -inf
    %v408 = vmax.f32 %v406, %v407
    %v409 = vsel %vm387, %v326, -inf
    %v410 = vsel %vm387, %v342, -inf
    %v411 = vmax.f32 %v409, %v410
    %v412 = vsel %vm387, %v358, -inf
    %v413 = vmax.f32 %v411, %v412
    %v414 = vsel %vm387, %v374, -inf
    %v415 = vmax.f32 %v413, %v414
    %v416 = vsel %vm387, %v327, -inf
    %v417 = vsel %vm387, %v343, -inf
    %v418 = vmax.f32 %v416, %v417
    %v419 = vsel %vm387, %v359, -inf
    %v420 = vmax.f32 %v418, %v419
    %v421 = vsel %vm387, %v375, -inf
    %v422 = vmax.f32 %v420, %v421
    %v423 = vsel %vm387, %v328, -inf
    %v424 = vsel %vm387, %v344, -inf
    %v425 = vmax.f32 %v423, %v424
    %v426 = vsel %vm387, %v360, -inf
    %v427 = vmax.f32 %v425, %v426
    %v428 = vsel %vm387, %v376, -inf
    %v429 = vmax.f32 %v427, %v428
    %v430 = vsel %vm387, %v329, -inf
    %v431 = vsel %vm387, %v345, -inf
    %v432 = vmax.f32 %v430, %v431
    %v433 = vsel %vm387, %v361, -inf
    %v434 = vmax.f32 %v432, %v433
    %v435 = vsel %vm387, %v377, -inf
    %v436 = vmax.f32 %v434, %v435
    %v437 = vsel %vm387, %v330, -inf
    %v438 = vsel %vm387, %v346, -inf
    %v439 = vmax.f32 %v437, %v438
    %v440 = vsel %vm387, %v362, -inf
    %v441 = vmax.f32 %v439, %v440
    %v442 = vsel %vm387, %v378, -inf
    %v443 = vmax.f32 %v441, %v442
    %v444 = vsel %vm387, %v331, -inf
    %v445 = vsel %vm387, %v347, -inf
    %v446 = vmax.f32 %v444, %v445
    %v447 = vsel %vm387, %v363, -inf
    %v448 = vmax.f32 %v446, %v447
    %v449 = vsel %vm387, %v379, -inf
    %v450 = vmax.f32 %v448, %v449
    %v451 = vsel %vm387, %v332, -inf
    %v452 = vsel %vm387, %v348, -inf
    %v453 = vmax.f32 %v451, %v452
    %v454 = vsel %vm387, %v364, -inf
    %v455 = vmax.f32 %v453, %v454
    %v456 = vsel %vm387, %v380, -inf
    %v457 = vmax.f32 %v455, %v456
    %v458 = vsel %vm387, %v333, -inf
    %v459 = vsel %vm387, %v349, -inf
    %v460 = vmax.f32 %v458, %v459
    %v461 = vsel %vm387, %v365, -inf
    %v462 = vmax.f32 %v460, %v461
    %v463 = vsel %vm387, %v381, -inf
    %v464 = vmax.f32 %v462, %v463
    %v465 = vsel %vm387, %v334, -inf
    %v466 = vsel %vm387, %v350, -inf
    %v467 = vmax.f32 %v465, %v466
    %v468 = vsel %vm387, %v366, -inf
    %v469 = vmax.f32 %v467, %v468
    %v470 = vsel %vm387, %v382, -inf
    %v471 = vmax.f32 %v469, %v470
    %v472 = vsel %vm387, %v335, -inf
    %v473 = vsel %vm387, %v351, -inf
    %v474 = vmax.f32 %v472, %v473
    %v475 = vsel %vm387, %v367, -inf
    %v476 = vmax.f32 %v474, %v475
    %v477 = vsel %vm387, %v383, -inf
    %v478 = vmax.f32 %v476, %v477
    %v479 = vsel %vm387, %v336, -inf
    %v480 = vsel %vm387, %v352, -inf
    %v481 = vmax.f32 %v479, %v480
    %v482 = vsel %vm387, %v368, -inf
    %v483 = vmax.f32 %v481, %v482
    %v484 = vsel %vm387, %v384, -inf
    %v485 = vmax.f32 %v483, %v484
    %v486 = vsel %vm387, %v337, -inf
    %v487 = vsel %vm387, %v353, -inf
    %v488 = vmax.f32 %v486, %v487
    %v489 = vsel %vm387, %v369, -inf
    %v490 = vmax.f32 %v488, %v489
    %v491 = vsel %vm387, %v385, -inf
    %v492 = vmax.f32 %v490, %v491
    %v493 = vsel %vm387, %v338, -inf
    %v494 = vsel %vm387, %v354, -inf
    %v495 = vmax.f32 %v493, %v494
    %v496 = vsel %vm387, %v370, -inf
    %v497 = vmax.f32 %v495, %v496
    %v498 = vsel %vm387, %v386, -inf
    %v499 = vmax.f32 %v497, %v498
    %v500 = vld [vmem:[%s5] sm:$0x3f]
    %v502 = vsel %vm387, %v394, 0
    %v505 = vsel %vm387, %v401, 0
    %v508 = vsel %vm387, %v408, 0
    %v511 = vsel %vm387, %v415, 0
    %v514 = vsel %vm387, %v422, 0
    %v517 = vsel %vm387, %v429, 0
    %v520 = vsel %vm387, %v436, 0
    %v523 = vsel %vm387, %v443, 0
    %v526 = vsel %vm387, %v450, 0
    %v529 = vsel %vm387, %v457, 0
    %v532 = vsel %vm387, %v464, 0
    %v535 = vsel %vm387, %v471, 0
    %v538 = vsel %vm387, %v478, 0
    %v541 = vsel %vm387, %v485, 0
    %v544 = vsel %vm387, %v492, 0
    %v547 = vsel %vm387, %v499, 0
    %vm549 = vcmask 1045504
    %v551 = vsel %vm549, %v500, 0
    %553 = vmatprep.subr.mxu0 0.0
    %554 = vmatpush1.msra.mxu0 0.0
    %555 = vmatprep.subr.mxu0 0.0
    %556 = vmatpush1.msra.mxu0 0.0
    %557 = vmatprep.subr.mxu0 0.0
    %558 = vmatpush1.msra.mxu0 0.0
    %559 = vmatprep.subr.mxu0 0.0
    %560 = vmatpush1.msra.mxu0 0.0
    %561 = vmatprep.subr.mxu0 0.0
    %562 = vmatpush1.msra.mxu0 0.0
    %563 = vmatprep.subr.mxu0 0.0
    %564 = vmatpush1.msra.mxu0 0.0
    %565 = vmatprep.subr.mxu0 0.0
    %566 = vmatpush1.msra.mxu0 0.0
    %567 = vmatprep.subr.mxu0 0.0
    %568 = vmatpush1.msra.mxu0 0.0
    %569 = vmatprep.subr.mxu0 0.0
    %570 = vmatpush1.msra.mxu0 0.0
    %571 = vmatprep.subr.mxu0 0.0
    %572 = vmatpush1.msra.mxu0 0.0
    %573 = vmatprep.subr.mxu0 0.0
    %574 = vmatpush1.msra.mxu0 0.0
    %575 = vmatprep.subr.mxu0 0.0
    %576 = vmatpush1.msra.mxu0 0.0
    %577 = vmatprep.subr.mxu0 0.0
    %578 = vmatpush1.msra.mxu0 0.0
    %579 = vmatprep.subr.mxu0 0.0
    %580 = vmatpush1.msra.mxu0 0.0
    %581 = vmatprep.subr.mxu0 0.0
    %582 = vmatpush1.msra.mxu0 0.0
    %583 = vmatprep.subr.mxu0 0.0
    %584 = vmatpush1.msra.mxu0 %v551
    %585 = vmatprep.subr.mxu0 0.0
    %586 = vmatpush2.msra.mxu0 0.0
    %587 = vmatprep.subr.mxu0 0.0
    %588 = vmatpush2.msra.mxu0 0.0
    %589 = vmatprep.subr.mxu0 0.0
    %590 = vmatpush2.msra.mxu0 0.0
    %591 = vmatprep.subr.mxu0 0.0
    %592 = vmatpush2.msra.mxu0 0.0
    %593 = vmatprep.subr.mxu0 0.0
    %594 = vmatpush2.msra.mxu0 0.0
    %595 = vmatprep.subr.mxu0 0.0
    %596 = vmatpush2.msra.mxu0 0.0
    %597 = vmatprep.subr.mxu0 0.0
    %598 = vmatpush2.msra.mxu0 0.0
    %599 = vmatprep.subr.mxu0 0.0
    %600 = vmatpush2.msra.mxu0 0.0
    %601 = vmatprep.subr.mxu0 0.0
    %602 = vmatpush2.msra.mxu0 0.0
    %603 = vmatprep.subr.mxu0 0.0
    %604 = vmatpush2.msra.mxu0 0.0
    %605 = vmatprep.subr.mxu0 0.0
    %606 = vmatpush2.msra.mxu0 0.0
    %607 = vmatprep.subr.mxu0 0.0
    %608 = vmatpush2.msra.mxu0 0.0
    %609 = vmatprep.subr.mxu0 0.0
    %610 = vmatpush2.msra.mxu0 0.0
    %611 = vmatprep.subr.mxu0 0.0
    %612 = vmatpush2.msra.mxu0 0.0
    %613 = vmatprep.subr.mxu0 0.0
    %614 = vmatpush2.msra.mxu0 0.0
    %615 = vmatprep.subr.mxu0 0.0
    %616 = vmatpush2.msra.mxu0 0.0
    %617 = vmatprep.mubr.f32.mxu0 0.0
    %618 = vmatmul.mubr.f32.gmra.mxu0 %v502
    %v619 = vpop.f32.mrf.mxu0
    %v620 = vadd.f32 0.0, %v619
    %v621 = vpop.f32.mrf.mxu0
    %622 = vmatprep.mubr.f32.mxu0 0.0
    %623 = vmatmul.mubr.f32.gmra.mxu0 %v505
    %v624 = vpop.f32.mrf.mxu0
    %v625 = vadd.f32 0.0, %v624
    %v626 = vpop.f32.mrf.mxu0
    %627 = vmatprep.mubr.f32.mxu0 0.0
    %628 = vmatmul.mubr.f32.gmra.mxu0 %v508
    %v629 = vpop.f32.mrf.mxu0
    %v630 = vadd.f32 0.0, %v629
    %v631 = vpop.f32.mrf.mxu0
    %632 = vmatprep.mubr.f32.mxu0 0.0
    %633 = vmatmul.mubr.f32.gmra.mxu0 %v511
    %v634 = vpop.f32.mrf.mxu0
    %v635 = vadd.f32 0.0, %v634
    %v636 = vpop.f32.mrf.mxu0
    %637 = vmatprep.mubr.f32.mxu0 0.0
    %638 = vmatmul.mubr.f32.gmra.mxu0 %v514
    %v639 = vpop.f32.mrf.mxu0
    %v640 = vadd.f32 0.0, %v639
    %v641 = vpop.f32.mrf.mxu0
    %642 = vmatprep.mubr.f32.mxu0 0.0
    %643 = vmatmul.mubr.f32.gmra.mxu0 %v517
    %v644 = vpop.f32.mrf.mxu0
    %v645 = vadd.f32 0.0, %v644
    %v646 = vpop.f32.mrf.mxu0
    %647 = vmatprep.mubr.f32.mxu0 0.0
    %648 = vmatmul.mubr.f32.gmra.mxu0 %v520
    %v649 = vpop.f32.mrf.mxu0
    %v650 = vadd.f32 0.0, %v649
    %v651 = vpop.f32.mrf.mxu0
    %652 = vmatprep.mubr.f32.mxu0 0.0
    %653 = vmatmul.mubr.f32.gmra.mxu0 %v523
    %v654 = vpop.f32.mrf.mxu0
    %v655 = vadd.f32 0.0, %v654
    %v656 = vpop.f32.mrf.mxu0
    %657 = vmatprep.mubr.f32.mxu0 0.0
    %658 = vmatmul.mubr.f32.gmra.mxu0 %v526
    %v659 = vpop.f32.mrf.mxu0
    %v660 = vadd.f32 0.0, %v659
    %v661 = vpop.f32.mrf.mxu0
    %662 = vmatprep.mubr.f32.mxu0 0.0
    %663 = vmatmul.mubr.f32.gmra.mxu0 %v529
    %v664 = vpop.f32.mrf.mxu0
    %v665 = vadd.f32 0.0, %v664
    %v666 = vpop.f32.mrf.mxu0
    %667 = vmatprep.mubr.f32.mxu0 0.0
    %668 = vmatmul.mubr.f32.gmra.mxu0 %v532
    %v669 = vpop.f32.mrf.mxu0
    %v670 = vadd.f32 0.0, %v669
    %v671 = vpop.f32.mrf.mxu0
    %672 = vmatprep.mubr.f32.mxu0 0.0
    %673 = vmatmul.mubr.f32.gmra.mxu0 %v535
    %v674 = vpop.f32.mrf.mxu0
    %v675 = vadd.f32 0.0, %v674
    %v676 = vpop.f32.mrf.mxu0
    %677 = vmatprep.mubr.f32.mxu0 0.0
    %678 = vmatmul.mubr.f32.gmra.mxu0 %v538
    %v679 = vpop.f32.mrf.mxu0
    %v680 = vadd.f32 0.0, %v679
    %v681 = vpop.f32.mrf.mxu0
    %682 = vmatprep.mubr.f32.mxu0 0.0
    %683 = vmatmul.mubr.f32.gmra.mxu0 %v541
    %v684 = vpop.f32.mrf.mxu0
    %v685 = vadd.f32 0.0, %v684
    %v686 = vpop.f32.mrf.mxu0
    %687 = vmatprep.mubr.f32.mxu0 0.0
    %688 = vmatmul.mubr.f32.gmra.mxu0 %v544
    %v689 = vpop.f32.mrf.mxu0
    %v690 = vadd.f32 0.0, %v689
    %v691 = vpop.f32.mrf.mxu0
    %692 = vmatprep.mubr.f32.mxu0 0.0
    %693 = vmatmul.mubr.f32.gmra.mxu0 %v547
    %v694 = vpop.f32.mrf.mxu0
    %v695 = vadd.f32 0.0, %v694
    %v696 = vpop.f32.mrf.mxu0
    %697 = vdwg.mxu0
    %v698 = vld [vmem:[%s6] sm:$0x1]
    %v700 = vlaneseq
    %v701 = vshrl.u32 %v700, 7
    %v702 = vsub.s32 0, %v701
    %v703 = vrot.slane %v698, %v702
    %v705 = vmul.f32 %v620, %v703
    %v706 = vmul.f32 %v625, %v703
    %v707 = vmul.f32 %v630, %v703
    %v708 = vmul.f32 %v635, %v703
    %v709 = vmul.f32 %v640, %v703
    %v710 = vmul.f32 %v645, %v703
    %v711 = vmul.f32 %v650, %v703
    %v712 = vmul.f32 %v655, %v703
    %v713 = vmul.f32 %v660, %v703
    %v714 = vmul.f32 %v665, %v703
    %v715 = vmul.f32 %v670, %v703
    %v716 = vmul.f32 %v675, %v703
    %v717 = vmul.f32 %v680, %v703
    %v718 = vmul.f32 %v685, %v703
    %v719 = vmul.f32 %v690, %v703
    %v720 = vmul.f32 %v695, %v703
    %v721 = vld [vmem:[%s7] sm:$0x1]
    %v723 = vlaneseq
    %v724 = vshrl.u32 %v723, 7
    %v725 = vsub.s32 0, %v724
    %v726 = vrot.slane %v721, %v725
    %v728 = vadd.f32 %v705, %v726
    %v729 = vadd.f32 %v706, %v726
    %v730 = vadd.f32 %v707, %v726
    %v731 = vadd.f32 %v708, %v726
    %v732 = vadd.f32 %v709, %v726
    %v733 = vadd.f32 %v710, %v726
    %v734 = vadd.f32 %v711, %v726
    %v735 = vadd.f32 %v712, %v726
    %v736 = vadd.f32 %v713, %v726
    %v737 = vadd.f32 %v714, %v726
    %v738 = vadd.f32 %v715, %v726
    %v739 = vadd.f32 %v716, %v726
    %v740 = vadd.f32 %v717, %v726
    %v741 = vadd.f32 %v718, %v726
    %v742 = vadd.f32 %v719, %v726
    %v743 = vadd.f32 %v720, %v726
    %v744 = vmax.f32 %v728, 0.0
    %v745 = vmax.f32 %v729, 0.0
    %v746 = vmax.f32 %v730, 0.0
    %v747 = vmax.f32 %v731, 0.0
    %v748 = vmax.f32 %v732, 0.0
    %v749 = vmax.f32 %v733, 0.0
    %v750 = vmax.f32 %v734, 0.0
    %v751 = vmax.f32 %v735, 0.0
    %v752 = vmax.f32 %v736, 0.0
    %v753 = vmax.f32 %v737, 0.0
    %v754 = vmax.f32 %v738, 0.0
    %v755 = vmax.f32 %v739, 0.0
    %v756 = vmax.f32 %v740, 0.0
    %v757 = vmax.f32 %v741, 0.0
    %v758 = vmax.f32 %v742, 0.0
    %v759 = vmax.f32 %v743, 0.0
    %760 = vst [vmem:[#allocation2 + $0x8] sm:$0xff] %v744
    %761 = vst [vmem:[#allocation2 + $0x18] sm:$0xff] %v745
    %762 = vst [vmem:[#allocation2 + $0x28] sm:$0xff] %v746
    %763 = vst [vmem:[#allocation2 + $0x38] sm:$0xff] %v747
    %764 = vst [vmem:[#allocation2 + $0x48] sm:$0xff] %v748
    %765 = vst [vmem:[#allocation2 + $0x58] sm:$0xff] %v749
    %766 = vst [vmem:[#allocation2 + $0x68] sm:$0xff] %v750
    %767 = vst [vmem:[#allocation2 + $0x78] sm:$0xff] %v751
    %768 = vst [vmem:[#allocation2 + $0x88] sm:$0xff] %v752
    %769 = vst [vmem:[#allocation2 + $0x98] sm:$0xff] %v753
    %770 = vst [vmem:[#allocation2 + $0xa8] sm:$0xff] %v754
    %771 = vst [vmem:[#allocation2 + $0xb8] sm:$0xff] %v755
    %772 = vst [vmem:[#allocation2 + $0xc8] sm:$0xff] %v756
    %773 = vst [vmem:[#allocation2 + $0xd8] sm:$0xff] %v757
    %774 = vst [vmem:[#allocation2 + $0xe8] sm:$0xff] %v758
    %775 = vst [vmem:[#allocation2 + $0xf8] sm:$0xff] %v759
    // Predicated region
    $region34: #{tpu_custom_call.1} parent=1 // pred_check
      _
    $region35: #{tpu_custom_call.1} parent=1 // pred_check_branch
      %777 = sbr.rel (0) target = $region37
    $region36: #{tpu_custom_call.1} parent=1 // pred_region
      %s779 = ssub.s32 4096, 4096
      %780 = vsyncadd [#allocation3], %s779
      %s781 = sshll.u32 [#allocation2], 4
      %s782 = int_to_ptr.vmem [resolvable:$true] %s781
      %787 = dma.vmem_to_hbm [thread:$0]  %s782, 4096, %s8, [#allocation3], 256, 256, 16
    $region37: #{tpu_custom_call.1} parent=1 // pred_fallthru
      _
    // Predicated region
    $region38: #{tpu_custom_call.1} parent=1 // pred_check
      _
    $region39: #{tpu_custom_call.1} parent=1 // pred_check_branch
      %789 = sbr.rel (0) target = $region41
    $region40: #{tpu_custom_call.1} parent=1 // pred_region
      %790 = dma.done [#allocation3], 4096
    $region41: #{tpu_custom_call.1} parent=1 // pred_fallthru
      _
    %791 = vsyncpa [#allocation3], 1

</llo_original>
